<compile_context>
chip_gen: v6e
topology: v6e:2x2x1
jax: 0.10.0
libtpu: 0.0.40
codegen_flags: <defaults>
</compile_context>

<pallas_src>
import functools
import math

import jax
import jax.numpy as jnp
from jax.experimental import pallas as pl
from jax.experimental.pallas import tpu as pltpu


# ---------------------------------------------------------------------------
# Fused whole-model kernel
# ---------------------------------------------------------------------------
def fused_fan_kernel(*refs, num_fan, p_dim):
    # refs: x, emb_w, emb_b, [w_full_i, b_full_i] * num_fan, out_w, out_b, o
    x_ref, emb_w_ref, emb_b_ref = refs[0], refs[1], refs[2]
    layer_refs = refs[3:3 + 2 * num_fan]
    out_w_ref = refs[3 + 2 * num_fan]
    out_b_ref = refs[4 + 2 * num_fan]
    o_ref = refs[5 + 2 * num_fan]

    inv_sqrt2 = 1.0 / math.sqrt(2.0)

    # Input NaN guard (torch.where(isnan, 0, src)).
    x = x_ref[...]
    x = jnp.where(jnp.isnan(x), 0.0, x)

    # Embedding linear (no NaN guard after embedding in the reference module).
    h = jnp.dot(x, emb_w_ref[...], preferred_element_type=jnp.float32) + emb_b_ref[...]

    sin_p = cos_p = g_p = None
    for li in range(num_fan):
        w_full = layer_refs[2 * li][...]        # (hidden, 2*p_dim + g_dim) == (hidden, hidden)
        b_full = layer_refs[2 * li + 1][...]    # (1, hidden), offsets pre-folded into bias

        if li == 0:
            # Dense embedding activation -> single fused matmul.
            z = jnp.dot(h, w_full, preferred_element_type=jnp.float32) + b_full
        else:
            # Concat-free: split this layer's weight rows and accumulate the
            # previous layer's (sin, cos, g) pieces directly.
            z = (jnp.dot(sin_p, w_full[:p_dim, :], preferred_element_type=jnp.float32)
                 + jnp.dot(cos_p, w_full[p_dim:2 * p_dim, :], preferred_element_type=jnp.float32)
                 + jnp.dot(g_p, w_full[2 * p_dim:, :], preferred_element_type=jnp.float32)
                 + b_full)

        # Columns of z: [p + off | p + pi/2 - off | g_lin] (offsets folded into b_full).
        p_plus = z[:, :p_dim]
        p_minus = z[:, p_dim:2 * p_dim]
        g_lin = z[:, 2 * p_dim:]

        # NaN guard on the phase arguments (FANLayerPhaseOffsetZero.forward).
        p_plus = jnp.where(jnp.isnan(p_plus), 0.0, p_plus)
        p_minus = jnp.where(jnp.isnan(p_minus), 0.0, p_minus)

        sin_p = jnp.sin(p_plus)
        cos_p = jnp.cos(p_minus)
        # Exact (erf) GELU, matching torch.nn.GELU() default.
        g_p = 0.5 * g_lin * (1.0 + jax.lax.erf(g_lin * inv_sqrt2))

        # Post-layer NaN guard applied piecewise == applied to the concat output.
        sin_p = jnp.where(jnp.isnan(sin_p), 0.0, sin_p)
        cos_p = jnp.where(jnp.isnan(cos_p), 0.0, cos_p)
        g_p = jnp.where(jnp.isnan(g_p), 0.0, g_p)

    # Output linear (it is appended to self.layers, so it gets the NaN guard too).
    out_w = out_w_ref[...]
    out = (jnp.dot(sin_p, out_w[:p_dim, :], preferred_element_type=jnp.float32)
           + jnp.dot(cos_p, out_w[p_dim:2 * p_dim, :], preferred_element_type=jnp.float32)
           + jnp.dot(g_p, out_w[2 * p_dim:, :], preferred_element_type=jnp.float32)
           + out_b_ref[...])
    out = jnp.where(jnp.isnan(out), 0.0, out)
    o_ref[...] = out


# ---------------------------------------------------------------------------
# Parameter init (mimics the PyTorch __init__) and fused-layout prep
# ---------------------------------------------------------------------------
def xavier_uniform(key, in_dim, out_dim, gain):
    a = gain * math.sqrt(6.0 / (in_dim + out_dim))
    return jax.random.uniform(key, (in_dim, out_dim), jnp.float32, -a, a)


def init_params(key, input_dim, output_dim, hidden_dim, num_layers,
                limit_phase_offset=True, max_phase=math.pi):
    assert num_layers >= 2
    n_fan = num_layers - 1
    keys = jax.random.split(key, 2 + 2 * n_fan)
    p_dim = hidden_dim // 4
    g_dim = hidden_dim // 2
    params = {
        "emb_w": xavier_uniform(keys[0], input_dim, hidden_dim, 0.1),
        "emb_b": jnp.zeros((1, hidden_dim), jnp.float32),
        "out_w": xavier_uniform(keys[1], hidden_dim, output_dim, 0.1),
        "out_b": jnp.zeros((1, output_dim), jnp.float32),
        "fan": [],
        "limit_phase_offset": limit_phase_offset,
        "max_phase": max_phase,
    }
    for i in range(n_fan):
        k_p, k_g = keys[2 + 2 * i], keys[3 + 2 * i]
        params["fan"].append({
            "wp": xavier_uniform(k_p, hidden_dim, p_dim, 0.1),
            "bp": jnp.zeros((1, p_dim), jnp.float32),
            "wg": xavier_uniform(k_g, hidden_dim, g_dim, 0.1),
            "bg": jnp.zeros((1, g_dim), jnp.float32),
            "offset": jnp.zeros((p_dim,), jnp.float32),   # nn.Parameter(torch.zeros(p_dim))
        })
    return params


def prepare_fused_params(params):
    """Pre-fold per-layer weights into [Wp | Wp | Wg] and offsets into the bias."""
    limit = params["limit_phase_offset"]
    max_phase = params["max_phase"]
    layers = []
    for lp in params["fan"]:
        off = max_phase * jnp.tanh(lp["offset"]) if limit else lp["offset"]
        off = off.reshape(1, -1)
        w_full = jnp.concatenate([lp["wp"], lp["wp"], lp["wg"]], axis=1)
        b_full = jnp.concatenate(
            [lp["bp"] + off, lp["bp"] + (math.pi / 2.0) - off, lp["bg"]], axis=1)
        layers.append((w_full, b_full))
    return {
        "emb_w": params["emb_w"], "emb_b": params["emb_b"],
        "layers": layers,
        "out_w": params["out_w"], "out_b": params["out_b"],
    }


# ---------------------------------------------------------------------------
# Forward (single fused pallas_call) and pure-JAX reference
# ---------------------------------------------------------------------------
def _normalize_input(x):
    # Mirrors the PyTorch dim handling (1D -> column, (B,1,D) -> (B,D), >3D -> flatten).
    if x.ndim == 1:
        x = x[:, None]
    elif x.ndim == 3 and x.shape[1] == 1:
        x = x[:, 0, :]
    elif x.ndim > 3:
        x = x.reshape(x.shape[0], -1)
    return x


def fan_model_forward(x, fused, *, batch_tile=None):
    x = _normalize_input(x)
    B, input_dim = x.shape
    hidden = fused["emb_w"].shape[1]
    output_dim = fused["out_w"].shape[1]
    p_dim = hidden // 4
    num_fan = len(fused["layers"])

    # Batch tiling: rows are f32 sublanes -> tile must be a multiple of 8 (or = B).
    if batch_tile is None:
        batch_tile = 512 if (B > 512 and B % 512 == 0) else B
    assert B % batch_tile == 0, "batch must be divisible by batch_tile"
    grid = (B // batch_tile,)

    inputs = [x, fused["emb_w"], fused["emb_b"]]
    in_specs = [
        pl.BlockSpec((batch_tile, input_dim), lambda i: (i, 0)),
        pl.BlockSpec(fused["emb_w"].shape, lambda i: (0, 0)),
        pl.BlockSpec(fused["emb_b"].shape, lambda i: (0, 0)),
    ]
    for w_full, b_full in fused["layers"]:
        inputs += [w_full, b_full]
        in_specs += [pl.BlockSpec(w_full.shape, lambda i: (0, 0)),
                     pl.BlockSpec(b_full.shape, lambda i: (0, 0))]
    inputs += [fused["out_w"], fused["out_b"]]
    in_specs += [pl.BlockSpec(fused["out_w"].shape, lambda i: (0, 0)),
                 pl.BlockSpec(fused["out_b"].shape, lambda i: (0, 0))]

    out_spec = pl.BlockSpec((batch_tile, output_dim), lambda i: (i, 0))

    flops = 2 * B * (input_dim * hidden + num_fan * hidden * hidden + hidden * output_dim)
    transcendentals = B * num_fan * hidden          # sin + cos + erf per layer
    bytes_accessed = 4 * (int(x.size) + B * output_dim
                          + sum(int(a.size) for a in inputs[1:]))

    kernel = functools.partial(fused_fan_kernel, num_fan=num_fan, p_dim=p_dim)
    return pl.pallas_call(
        kernel,
        out_shape=jax.ShapeDtypeStruct((B, output_dim), jnp.float32),
        grid=grid,
        in_specs=in_specs,
        out_specs=out_spec,
        compiler_params=pltpu.CompilerParams(dimension_semantics=("parallel",)),
        cost_estimate=pl.CostEstimate(flops=flops,
                                      transcendentals=transcendentals,
                                      bytes_accessed=bytes_accessed),
    )(*inputs)


def fan_model_reference(x, params):
    x = _normalize_input(x)
    x = jnp.where(jnp.isnan(x), 0.0, x)
    h = x @ params["emb_w"] + params["emb_b"]
    for lp in params["fan"]:
        off = (params["max_phase"] * jnp.tanh(lp["offset"])
               if params["limit_phase_offset"] else lp["offset"])
        p = h @ lp["wp"] + lp["bp"]
        g = jax.nn.gelu(h @ lp["wg"] + lp["bg"], approximate=False)
        sin_part = jnp.sin(p + off)
        cos_part = jnp.cos(p + math.pi / 2.0 - off)
        h = jnp.concatenate([sin_part, cos_part, g], axis=-1)
    return h @ params["out_w"] + params["out_b"]


if __name__ == "__main__":
    # Small shapes consistent with the module's constructor arguments.
    batch, input_dim, output_dim, hidden_dim, num_layers = 8, 4, 2, 32, 3

    key = jax.random.PRNGKey(0)
    k_params, k_x = jax.random.split(key)
    params = init_params(k_params, input_dim, output_dim, hidden_dim, num_layers)
    fused = prepare_fused_params(params)
    x = jax.random.normal(k_x, (batch, input_dim), jnp.float32)

    out = fan_model_forward(x, fused)
    out = jax.block_until_ready(out)

    ref = fan_model_reference(x, params)
    assert out.shape == (batch, output_dim)
    assert jnp.allclose(out, ref, rtol=1e-5, atol=1e-5), (
        f"mismatch: max abs err {jnp.max(jnp.abs(out - ref))}")

    print("KERNEL_OK")
</pallas_src>

<mosaic_0001>
module attributes {stable_mosaic.version = 11 : i64} {
  func.func @fused_fan_kernel(%arg0: i32, %arg1: memref<8x4xf32, #tpu.memory_space<vmem>>, %arg2: memref<4x32xf32, #tpu.memory_space<vmem>>, %arg3: memref<1x32xf32, #tpu.memory_space<vmem>>, %arg4: memref<32x32xf32, #tpu.memory_space<vmem>>, %arg5: memref<1x32xf32, #tpu.memory_space<vmem>>, %arg6: memref<32x32xf32, #tpu.memory_space<vmem>>, %arg7: memref<1x32xf32, #tpu.memory_space<vmem>>, %arg8: memref<32x2xf32, #tpu.memory_space<vmem>>, %arg9: memref<1x2xf32, #tpu.memory_space<vmem>>, %arg10: memref<8x2xf32, #tpu.memory_space<vmem>>) attributes {dimension_semantics = [#tpu.dimension_semantics<parallel>], iteration_bounds = array<i64: 1>, scalar_prefetch = 0 : i64, scratch_operands = 0 : i64, tpu.core_type = #tpu.core_type<tc>, window_params = [{transform_indices = @transform_0, window_bounds = array<i64: 8, 4>}, {pipeline_mode = #tpu.pipeline_mode<synchronous>, transform_indices = @transform_1, window_bounds = array<i64: 4, 32>}, {pipeline_mode = #tpu.pipeline_mode<synchronous>, transform_indices = @transform_2, window_bounds = array<i64: 1, 32>}, {pipeline_mode = #tpu.pipeline_mode<synchronous>, transform_indices = @transform_3, window_bounds = array<i64: 32, 32>}, {pipeline_mode = #tpu.pipeline_mode<synchronous>, transform_indices = @transform_4, window_bounds = array<i64: 1, 32>}, {pipeline_mode = #tpu.pipeline_mode<synchronous>, transform_indices = @transform_5, window_bounds = array<i64: 32, 32>}, {pipeline_mode = #tpu.pipeline_mode<synchronous>, transform_indices = @transform_6, window_bounds = array<i64: 1, 32>}, {pipeline_mode = #tpu.pipeline_mode<synchronous>, transform_indices = @transform_7, window_bounds = array<i64: 32, 2>}, {pipeline_mode = #tpu.pipeline_mode<synchronous>, transform_indices = @transform_8, window_bounds = array<i64: 1, 2>}, {transform_indices = @transform_9, window_bounds = array<i64: 8, 2>}]} {
    %c0 = arith.constant 0 : index
    %c0_0 = arith.constant 0 : index
    %0 = vector.load %arg1[%c0, %c0_0] : memref<8x4xf32, #tpu.memory_space<vmem>>, vector<8x4xf32>
    %1 = arith.cmpf one, %0, %0 : vector<8x4xf32>
    %cst = arith.constant 0.000000e+00 : f32
    %2 = vector.broadcast %cst : f32 to vector<8x4xf32>
    %3 = arith.select %1, %2, %0 : vector<8x4xi1>, vector<8x4xf32>
    %c0_1 = arith.constant 0 : index
    %c0_2 = arith.constant 0 : index
    %4 = vector.load %arg2[%c0_1, %c0_2] : memref<4x32xf32, #tpu.memory_space<vmem>>, vector<4x32xf32>
    %cst_3 = arith.constant dense<0.000000e+00> : vector<8x32xf32>
    %5 = tpu.matmul %3, %4, %cst_3 {dimension_numbers = #tpu.dot_dimension_numbers<[1], [0], [0], [1], [0, 0, 1, 1], [], []>} : vector<8x4xf32>, vector<4x32xf32>, vector<8x32xf32> -> vector<8x32xf32>
    %c0_4 = arith.constant 0 : index
    %c0_5 = arith.constant 0 : index
    %6 = vector.load %arg3[%c0_4, %c0_5] : memref<1x32xf32, #tpu.memory_space<vmem>>, vector<1x32xf32>
    %7 = vector.broadcast %6 : vector<1x32xf32> to vector<8x32xf32>
    %8 = arith.addf %5, %7 : vector<8x32xf32>
    %c0_6 = arith.constant 0 : index
    %c0_7 = arith.constant 0 : index
    %9 = vector.load %arg4[%c0_6, %c0_7] : memref<32x32xf32, #tpu.memory_space<vmem>>, vector<32x32xf32>
    %c0_8 = arith.constant 0 : index
    %c0_9 = arith.constant 0 : index
    %10 = vector.load %arg5[%c0_8, %c0_9] : memref<1x32xf32, #tpu.memory_space<vmem>>, vector<1x32xf32>
    %cst_10 = arith.constant dense<0.000000e+00> : vector<8x32xf32>
    %11 = tpu.matmul %8, %9, %cst_10 {dimension_numbers = #tpu.dot_dimension_numbers<[1], [0], [0], [1], [0, 0, 1, 1], [], []>} : vector<8x32xf32>, vector<32x32xf32>, vector<8x32xf32> -> vector<8x32xf32>
    %12 = vector.broadcast %10 : vector<1x32xf32> to vector<8x32xf32>
    %13 = arith.addf %11, %12 : vector<8x32xf32>
    %14 = vector.extract_strided_slice %13 {offsets = [0, 0], sizes = [8, 8], strides = [1, 1]} : vector<8x32xf32> to vector<8x8xf32>
    %15 = vector.extract_strided_slice %13 {offsets = [0, 8], sizes = [8, 8], strides = [1, 1]} : vector<8x32xf32> to vector<8x8xf32>
    %16 = vector.extract_strided_slice %13 {offsets = [0, 16], sizes = [8, 16], strides = [1, 1]} : vector<8x32xf32> to vector<8x16xf32>
    %17 = arith.cmpf one, %14, %14 : vector<8x8xf32>
    %cst_11 = arith.constant 0.000000e+00 : f32
    %18 = vector.broadcast %cst_11 : f32 to vector<8x8xf32>
    %19 = arith.select %17, %18, %14 : vector<8x8xi1>, vector<8x8xf32>
    %20 = arith.cmpf one, %15, %15 : vector<8x8xf32>
    %cst_12 = arith.constant 0.000000e+00 : f32
    %21 = vector.broadcast %cst_12 : f32 to vector<8x8xf32>
    %22 = arith.select %20, %21, %15 : vector<8x8xi1>, vector<8x8xf32>
    %23 = math.sin %19 : vector<8x8xf32>
    %24 = math.cos %22 : vector<8x8xf32>
    %cst_13 = arith.constant 5.000000e-01 : f32
    %25 = vector.broadcast %cst_13 : f32 to vector<8x16xf32>
    %26 = arith.mulf %25, %16 : vector<8x16xf32>
    %cst_14 = arith.constant 0.707106769 : f32
    %27 = vector.broadcast %cst_14 : f32 to vector<8x16xf32>
    %28 = arith.mulf %16, %27 : vector<8x16xf32>
    %29 = math.erf %28 : vector<8x16xf32>
    %cst_15 = arith.constant 1.000000e+00 : f32
    %30 = vector.broadcast %cst_15 : f32 to vector<8x16xf32>
    %31 = arith.addf %30, %29 : vector<8x16xf32>
    %32 = arith.mulf %26, %31 : vector<8x16xf32>
    %33 = arith.cmpf one, %23, %23 : vector<8x8xf32>
    %cst_16 = arith.constant 0.000000e+00 : f32
    %34 = vector.broadcast %cst_16 : f32 to vector<8x8xf32>
    %35 = arith.select %33, %34, %23 : vector<8x8xi1>, vector<8x8xf32>
    %36 = arith.cmpf one, %24, %24 : vector<8x8xf32>
    %cst_17 = arith.constant 0.000000e+00 : f32
    %37 = vector.broadcast %cst_17 : f32 to vector<8x8xf32>
    %38 = arith.select %36, %37, %24 : vector<8x8xi1>, vector<8x8xf32>
    %39 = arith.cmpf one, %32, %32 : vector<8x16xf32>
    %cst_18 = arith.constant 0.000000e+00 : f32
    %40 = vector.broadcast %cst_18 : f32 to vector<8x16xf32>
    %41 = arith.select %39, %40, %32 : vector<8x16xi1>, vector<8x16xf32>
    %c0_19 = arith.constant 0 : index
    %c0_20 = arith.constant 0 : index
    %42 = vector.load %arg6[%c0_19, %c0_20] : memref<32x32xf32, #tpu.memory_space<vmem>>, vector<32x32xf32>
    %c0_21 = arith.constant 0 : index
    %c0_22 = arith.constant 0 : index
    %43 = vector.load %arg7[%c0_21, %c0_22] : memref<1x32xf32, #tpu.memory_space<vmem>>, vector<1x32xf32>
    %44 = vector.extract_strided_slice %42 {offsets = [0, 0], sizes = [8, 32], strides = [1, 1]} : vector<32x32xf32> to vector<8x32xf32>
    %cst_23 = arith.constant dense<0.000000e+00> : vector<8x32xf32>
    %45 = tpu.matmul %35, %44, %cst_23 {dimension_numbers = #tpu.dot_dimension_numbers<[1], [0], [0], [1], [0, 0, 1, 1], [], []>} : vector<8x8xf32>, vector<8x32xf32>, vector<8x32xf32> -> vector<8x32xf32>
    %46 = vector.extract_strided_slice %42 {offsets = [8, 0], sizes = [8, 32], strides = [1, 1]} : vector<32x32xf32> to vector<8x32xf32>
    %cst_24 = arith.constant dense<0.000000e+00> : vector<8x32xf32>
    %47 = tpu.matmul %38, %46, %cst_24 {dimension_numbers = #tpu.dot_dimension_numbers<[1], [0], [0], [1], [0, 0, 1, 1], [], []>} : vector<8x8xf32>, vector<8x32xf32>, vector<8x32xf32> -> vector<8x32xf32>
    %48 = arith.addf %45, %47 : vector<8x32xf32>
    %49 = vector.extract_strided_slice %42 {offsets = [16, 0], sizes = [16, 32], strides = [1, 1]} : vector<32x32xf32> to vector<16x32xf32>
    %cst_25 = arith.constant dense<0.000000e+00> : vector<8x32xf32>
    %50 = tpu.matmul %41, %49, %cst_25 {dimension_numbers = #tpu.dot_dimension_numbers<[1], [0], [0], [1], [0, 0, 1, 1], [], []>} : vector<8x16xf32>, vector<16x32xf32>, vector<8x32xf32> -> vector<8x32xf32>
    %51 = arith.addf %48, %50 : vector<8x32xf32>
    %52 = vector.broadcast %43 : vector<1x32xf32> to vector<8x32xf32>
    %53 = arith.addf %51, %52 : vector<8x32xf32>
    %54 = vector.extract_strided_slice %53 {offsets = [0, 0], sizes = [8, 8], strides = [1, 1]} : vector<8x32xf32> to vector<8x8xf32>
    %55 = vector.extract_strided_slice %53 {offsets = [0, 8], sizes = [8, 8], strides = [1, 1]} : vector<8x32xf32> to vector<8x8xf32>
    %56 = vector.extract_strided_slice %53 {offsets = [0, 16], sizes = [8, 16], strides = [1, 1]} : vector<8x32xf32> to vector<8x16xf32>
    %57 = arith.cmpf one, %54, %54 : vector<8x8xf32>
    %cst_26 = arith.constant 0.000000e+00 : f32
    %58 = vector.broadcast %cst_26 : f32 to vector<8x8xf32>
    %59 = arith.select %57, %58, %54 : vector<8x8xi1>, vector<8x8xf32>
    %60 = arith.cmpf one, %55, %55 : vector<8x8xf32>
    %cst_27 = arith.constant 0.000000e+00 : f32
    %61 = vector.broadcast %cst_27 : f32 to vector<8x8xf32>
    %62 = arith.select %60, %61, %55 : vector<8x8xi1>, vector<8x8xf32>
    %63 = math.sin %59 : vector<8x8xf32>
    %64 = math.cos %62 : vector<8x8xf32>
    %cst_28 = arith.constant 5.000000e-01 : f32
    %65 = vector.broadcast %cst_28 : f32 to vector<8x16xf32>
    %66 = arith.mulf %65, %56 : vector<8x16xf32>
    %cst_29 = arith.constant 0.707106769 : f32
    %67 = vector.broadcast %cst_29 : f32 to vector<8x16xf32>
    %68 = arith.mulf %56, %67 : vector<8x16xf32>
    %69 = math.erf %68 : vector<8x16xf32>
    %cst_30 = arith.constant 1.000000e+00 : f32
    %70 = vector.broadcast %cst_30 : f32 to vector<8x16xf32>
    %71 = arith.addf %70, %69 : vector<8x16xf32>
    %72 = arith.mulf %66, %71 : vector<8x16xf32>
    %73 = arith.cmpf one, %63, %63 : vector<8x8xf32>
    %cst_31 = arith.constant 0.000000e+00 : f32
    %74 = vector.broadcast %cst_31 : f32 to vector<8x8xf32>
    %75 = arith.select %73, %74, %63 : vector<8x8xi1>, vector<8x8xf32>
    %76 = arith.cmpf one, %64, %64 : vector<8x8xf32>
    %cst_32 = arith.constant 0.000000e+00 : f32
    %77 = vector.broadcast %cst_32 : f32 to vector<8x8xf32>
    %78 = arith.select %76, %77, %64 : vector<8x8xi1>, vector<8x8xf32>
    %79 = arith.cmpf one, %72, %72 : vector<8x16xf32>
    %cst_33 = arith.constant 0.000000e+00 : f32
    %80 = vector.broadcast %cst_33 : f32 to vector<8x16xf32>
    %81 = arith.select %79, %80, %72 : vector<8x16xi1>, vector<8x16xf32>
    %c0_34 = arith.constant 0 : index
    %c0_35 = arith.constant 0 : index
    %82 = vector.load %arg8[%c0_34, %c0_35] : memref<32x2xf32, #tpu.memory_space<vmem>>, vector<32x2xf32>
    %83 = vector.extract_strided_slice %82 {offsets = [0, 0], sizes = [8, 2], strides = [1, 1]} : vector<32x2xf32> to vector<8x2xf32>
    %cst_36 = arith.constant dense<0.000000e+00> : vector<8x2xf32>
    %84 = tpu.matmul %75, %83, %cst_36 {dimension_numbers = #tpu.dot_dimension_numbers<[1], [0], [0], [1], [0, 0, 1, 1], [], []>} : vector<8x8xf32>, vector<8x2xf32>, vector<8x2xf32> -> vector<8x2xf32>
    %85 = vector.extract_strided_slice %82 {offsets = [8, 0], sizes = [8, 2], strides = [1, 1]} : vector<32x2xf32> to vector<8x2xf32>
    %cst_37 = arith.constant dense<0.000000e+00> : vector<8x2xf32>
    %86 = tpu.matmul %78, %85, %cst_37 {dimension_numbers = #tpu.dot_dimension_numbers<[1], [0], [0], [1], [0, 0, 1, 1], [], []>} : vector<8x8xf32>, vector<8x2xf32>, vector<8x2xf32> -> vector<8x2xf32>
    %87 = arith.addf %84, %86 : vector<8x2xf32>
    %88 = vector.extract_strided_slice %82 {offsets = [16, 0], sizes = [16, 2], strides = [1, 1]} : vector<32x2xf32> to vector<16x2xf32>
    %cst_38 = arith.constant dense<0.000000e+00> : vector<8x2xf32>
    %89 = tpu.matmul %81, %88, %cst_38 {dimension_numbers = #tpu.dot_dimension_numbers<[1], [0], [0], [1], [0, 0, 1, 1], [], []>} : vector<8x16xf32>, vector<16x2xf32>, vector<8x2xf32> -> vector<8x2xf32>
    %90 = arith.addf %87, %89 : vector<8x2xf32>
    %c0_39 = arith.constant 0 : index
    %c0_40 = arith.constant 0 : index
    %91 = vector.load %arg9[%c0_39, %c0_40] : memref<1x2xf32, #tpu.memory_space<vmem>>, vector<1x2xf32>
    %92 = vector.broadcast %91 : vector<1x2xf32> to vector<8x2xf32>
    %93 = arith.addf %90, %92 : vector<8x2xf32>
    %94 = arith.cmpf one, %93, %93 : vector<8x2xf32>
    %cst_41 = arith.constant 0.000000e+00 : f32
    %95 = vector.broadcast %cst_41 : f32 to vector<8x2xf32>
    %96 = arith.select %94, %95, %93 : vector<8x2xi1>, vector<8x2xf32>
    %c0_42 = arith.constant 0 : index
    %c0_43 = arith.constant 0 : index
    %97 = vector.load %arg10[%c0_42, %c0_43] : memref<8x2xf32, #tpu.memory_space<vmem>>, vector<8x2xf32>
    tpu.vector_store %arg10[%c0_42, %c0_43], %96 {strides = array<i32>} : memref<8x2xf32, #tpu.memory_space<vmem>>, vector<8x2xf32>,
    return
  }
  func.func @transform_0(%arg0: i32) -> (i32, i32) {
    %c0_i32 = arith.constant 0 : i32
    %c0_i32_0 = arith.constant 0 : i32
    return %arg0, %c0_i32 : i32, i32
  }
  func.func @transform_1(%arg0: i32) -> (i32, i32) {
    %c0_i32 = arith.constant 0 : i32
    %c0_i32_0 = arith.constant 0 : i32
    %c0_i32_1 = arith.constant 0 : i32
    return %c0_i32, %c0_i32_0 : i32, i32
  }
  func.func @transform_2(%arg0: i32) -> (i32, i32) {
    %c0_i32 = arith.constant 0 : i32
    %c0_i32_0 = arith.constant 0 : i32
    %c0_i32_1 = arith.constant 0 : i32
    return %c0_i32, %c0_i32_0 : i32, i32
  }
  func.func @transform_3(%arg0: i32) -> (i32, i32) {
    %c0_i32 = arith.constant 0 : i32
    %c0_i32_0 = arith.constant 0 : i32
    %c0_i32_1 = arith.constant 0 : i32
    return %c0_i32, %c0_i32_0 : i32, i32
  }
  func.func @transform_4(%arg0: i32) -> (i32, i32) {
    %c0_i32 = arith.constant 0 : i32
    %c0_i32_0 = arith.constant 0 : i32
    %c0_i32_1 = arith.constant 0 : i32
    return %c0_i32, %c0_i32_0 : i32, i32
  }
  func.func @transform_5(%arg0: i32) -> (i32, i32) {
    %c0_i32 = arith.constant 0 : i32
    %c0_i32_0 = arith.constant 0 : i32
    %c0_i32_1 = arith.constant 0 : i32
    return %c0_i32, %c0_i32_0 : i32, i32
  }
  func.func @transform_6(%arg0: i32) -> (i32, i32) {
    %c0_i32 = arith.constant 0 : i32
    %c0_i32_0 = arith.constant 0 : i32
    %c0_i32_1 = arith.constant 0 : i32
    return %c0_i32, %c0_i32_0 : i32, i32
  }
  func.func @transform_7(%arg0: i32) -> (i32, i32) {
    %c0_i32 = arith.constant 0 : i32
    %c0_i32_0 = arith.constant 0 : i32
    %c0_i32_1 = arith.constant 0 : i32
    return %c0_i32, %c0_i32_0 : i32, i32
  }
  func.func @transform_8(%arg0: i32) -> (i32, i32) {
    %c0_i32 = arith.constant 0 : i32
    %c0_i32_0 = arith.constant 0 : i32
    %c0_i32_1 = arith.constant 0 : i32
    return %c0_i32, %c0_i32_0 : i32, i32
  }
  func.func @transform_9(%arg0: i32) -> (i32, i32) {
    %c0_i32 = arith.constant 0 : i32
    %c0_i32_0 = arith.constant 0 : i32
    return %arg0, %c0_i32 : i32, i32
  }
}

</mosaic_0001>

<llo_original>
// kernel: tpu_custom_call.1
$region0: #{tpu_custom_call.1}
  #allocation0 [shape = 'u32[]', space=smem, size = 0x4, offset = 0x4, fixed_abs, tag = 'smem constant byte address 0x4 - core index']
  #allocation1 [shape = 'u32[144,128]{1,0:T(1,128)}', space=vmem, size = 0x12000, scoped, tag = 'internal scratch']
  %s0 = inlined_call_operand.vmem [shape: f32[8,4], index: 0, kind: input, shape index: {}]
  %s1 = inlined_call_operand.vmem [shape: f32[4,32], index: 1, kind: input, shape index: {}]
  %s2 = inlined_call_operand.vmem [shape: f32[1,32], index: 2, kind: input, shape index: {}]
  %s3 = inlined_call_operand.vmem [shape: f32[32,32], index: 3, kind: input, shape index: {}]
  %s4 = inlined_call_operand.vmem [shape: f32[1,32], index: 4, kind: input, shape index: {}]
  %s5 = inlined_call_operand.hbm [shape: f32[32,32], index: 5, kind: input, shape index: {}]
  %s6 = inlined_call_operand.vmem [shape: f32[1,32], index: 6, kind: input, shape index: {}]
  %s7 = inlined_call_operand.vmem [shape: f32[32,2], index: 7, kind: input, shape index: {}]
  %s8 = inlined_call_operand.vmem [shape: f32[1,2], index: 8, kind: input, shape index: {}]
  %s9 = inlined_call_operand.vmem [shape: f32[8,2], index: 9, kind: output, shape index: {}]
  %s10 = sld [smem:[#allocation0]]
  $region50: #{tpu_custom_call.1} parent=0
    _
  %s12 = ssub.s32 1, %s10
  %s13 = scalar_select 0, %s12, %s10
  $region1: #{tpu_custom_call.1} parent=0
    #allocation2 [shape = 'u8[16384]{0}', space=vmem, size = 0x4000, scoped, tag = 'input window, operand 5, single buffered']
    #allocation3 [shape = 's32[1]{0}', space=sflag, size = 0x4, scoped, tag = 'scoped memory for tpu_custom_call.1']
    %14 = vsyncpa [#allocation3], 0
    // Predicated region
    $region2: #{tpu_custom_call.1} parent=1 // pred_check
      _
    $region3: #{tpu_custom_call.1} parent=1 // pred_check_branch
      %16 = sbr.rel (0) target = $region5
    $region4: #{tpu_custom_call.1} parent=1 // pred_region
      _
    $region5: #{tpu_custom_call.1} parent=1 // pred_fallthru
      _
    // Predicated region
    $region6: #{tpu_custom_call.1} parent=1 // pred_check
      _
    $region7: #{tpu_custom_call.1} parent=1 // pred_check_branch
      %18 = sbr.rel (0) target = $region9
    $region8: #{tpu_custom_call.1} parent=1 // pred_region
      _
    $region9: #{tpu_custom_call.1} parent=1 // pred_fallthru
      _
    // Predicated region
    $region10: #{tpu_custom_call.1} parent=1 // pred_check
      _
    $region11: #{tpu_custom_call.1} parent=1 // pred_check_branch
      %20 = sbr.rel (0) target = $region13
    $region12: #{tpu_custom_call.1} parent=1 // pred_region
      _
    $region13: #{tpu_custom_call.1} parent=1 // pred_fallthru
      _
    // Predicated region
    $region14: #{tpu_custom_call.1} parent=1 // pred_check
      _
    $region15: #{tpu_custom_call.1} parent=1 // pred_check_branch
      %22 = sbr.rel (0) target = $region17
    $region16: #{tpu_custom_call.1} parent=1 // pred_region
      _
    $region17: #{tpu_custom_call.1} parent=1 // pred_fallthru
      _
    // Predicated region
    $region18: #{tpu_custom_call.1} parent=1 // pred_check
      _
    $region19: #{tpu_custom_call.1} parent=1 // pred_check_branch
      %24 = sbr.rel (0) target = $region21
    $region20: #{tpu_custom_call.1} parent=1 // pred_region
      _
    $region21: #{tpu_custom_call.1} parent=1 // pred_fallthru
      _
    // Predicated region
    $region22: #{tpu_custom_call.1} parent=1 // pred_check
      _
    $region23: #{tpu_custom_call.1} parent=1 // pred_check_branch
      %26 = sbr.rel (0) target = $region25
    $region24: #{tpu_custom_call.1} parent=1 // pred_region
      %s28 = ssub.s32 512, 512
      %29 = vsyncadd [#allocation3], %s28
      %s30 = sshll.u32 [#allocation2], 4
      %s31 = int_to_ptr.vmem [resolvable:$true] %s30
      %36 = dma.hbm_to_vmem [thread:$0]  %s5, 512, %s31, [#allocation3], 128, 128, 8
    $region25: #{tpu_custom_call.1} parent=1 // pred_fallthru
      _
    // Predicated region
    $region26: #{tpu_custom_call.1} parent=1 // pred_check
      _
    $region27: #{tpu_custom_call.1} parent=1 // pred_check_branch
      %38 = sbr.rel (0) target = $region29
    $region28: #{tpu_custom_call.1} parent=1 // pred_region
      _
    $region29: #{tpu_custom_call.1} parent=1 // pred_fallthru
      _
    // Predicated region
    $region30: #{tpu_custom_call.1} parent=1 // pred_check
      _
    $region31: #{tpu_custom_call.1} parent=1 // pred_check_branch
      %40 = sbr.rel (0) target = $region33
    $region32: #{tpu_custom_call.1} parent=1 // pred_region
      _
    $region33: #{tpu_custom_call.1} parent=1 // pred_fallthru
      _
    // Predicated region
    $region34: #{tpu_custom_call.1} parent=1 // pred_check
      _
    $region35: #{tpu_custom_call.1} parent=1 // pred_check_branch
      %42 = sbr.rel (0) target = $region37
    $region36: #{tpu_custom_call.1} parent=1 // pred_region
      _
    $region37: #{tpu_custom_call.1} parent=1 // pred_fallthru
      _
    // Predicated region
    $region38: #{tpu_custom_call.1} parent=1 // pred_check
      _
    $region39: #{tpu_custom_call.1} parent=1 // pred_check_branch
      %44 = sbr.rel (0) target = $region41
    $region40: #{tpu_custom_call.1} parent=1 // pred_region
      %45 = dma.done [#allocation3], 512
    $region41: #{tpu_custom_call.1} parent=1 // pred_fallthru
      _
    %v46 = vld [vmem:[%s0] sm:$0xff]
    %vm47 = vcmp.ne.f32.partialorder %v46, %v46
    %v48 = vsel %vm47, 0.0, %v46
    %v49 = vld [vmem:[%s1] sm:$0xf]
    %v50 = vld [vmem:[%s2] sm:$0x1]
    %v52 = vlaneseq
    %v53 = vshrl.u32 %v52, 7
    %v54 = vsub.s32 0, %v53
    %v55 = vrot.slane %v50, %v54
    %vm57 = vcmask 31744
    %v59 = vsel %vm57, %v48, 0
    %vm61 = vcmask 1043456
    %v63 = vsel %vm61, %v49, 0
    %65 = vmatprep.subr.mxu0 0.0
    %66 = vmatpush1.msra.mxu0 0.0
    %67 = vmatprep.subr.mxu0 0.0
    %68 = vmatpush1.msra.mxu0 0.0
    %69 = vmatprep.subr.mxu0 0.0
    %70 = vmatpush1.msra.mxu0 0.0
    %71 = vmatprep.subr.mxu0 0.0
    %72 = vmatpush1.msra.mxu0 0.0
    %73 = vmatprep.subr.mxu0 0.0
    %74 = vmatpush1.msra.mxu0 0.0
    %75 = vmatprep.subr.mxu0 0.0
    %76 = vmatpush1.msra.mxu0 0.0
    %77 = vmatprep.subr.mxu0 0.0
    %78 = vmatpush1.msra.mxu0 0.0
    %79 = vmatprep.subr.mxu0 0.0
    %80 = vmatpush1.msra.mxu0 0.0
    %81 = vmatprep.subr.mxu0 0.0
    %82 = vmatpush1.msra.mxu0 0.0
    %83 = vmatprep.subr.mxu0 0.0
    %84 = vmatpush1.msra.mxu0 0.0
    %85 = vmatprep.subr.mxu0 0.0
    %86 = vmatpush1.msra.mxu0 0.0
    %87 = vmatprep.subr.mxu0 0.0
    %88 = vmatpush1.msra.mxu0 0.0
    %89 = vmatprep.subr.mxu0 0.0
    %90 = vmatpush1.msra.mxu0 0.0
    %91 = vmatprep.subr.mxu0 0.0
    %92 = vmatpush1.msra.mxu0 0.0
    %93 = vmatprep.subr.mxu0 0.0
    %94 = vmatpush1.msra.mxu0 0.0
    %95 = vmatprep.subr.mxu0 0.0
    %96 = vmatpush1.msra.mxu0 %v63
    %97 = vmatprep.subr.mxu0 0.0
    %98 = vmatpush2.msra.mxu0 0.0
    %99 = vmatprep.subr.mxu0 0.0
    %100 = vmatpush2.msra.mxu0 0.0
    %101 = vmatprep.subr.mxu0 0.0
    %102 = vmatpush2.msra.mxu0 0.0
    %103 = vmatprep.subr.mxu0 0.0
    %104 = vmatpush2.msra.mxu0 0.0
    %105 = vmatprep.subr.mxu0 0.0
    %106 = vmatpush2.msra.mxu0 0.0
    %107 = vmatprep.subr.mxu0 0.0
    %108 = vmatpush2.msra.mxu0 0.0
    %109 = vmatprep.subr.mxu0 0.0
    %110 = vmatpush2.msra.mxu0 0.0
    %111 = vmatprep.subr.mxu0 0.0
    %112 = vmatpush2.msra.mxu0 0.0
    %113 = vmatprep.subr.mxu0 0.0
    %114 = vmatpush2.msra.mxu0 0.0
    %115 = vmatprep.subr.mxu0 0.0
    %116 = vmatpush2.msra.mxu0 0.0
    %117 = vmatprep.subr.mxu0 0.0
    %118 = vmatpush2.msra.mxu0 0.0
    %119 = vmatprep.subr.mxu0 0.0
    %120 = vmatpush2.msra.mxu0 0.0
    %121 = vmatprep.subr.mxu0 0.0
    %122 = vmatpush2.msra.mxu0 0.0
    %123 = vmatprep.subr.mxu0 0.0
    %124 = vmatpush2.msra.mxu0 0.0
    %125 = vmatprep.subr.mxu0 0.0
    %126 = vmatpush2.msra.mxu0 0.0
    %127 = vmatprep.subr.mxu0 0.0
    %128 = vmatpush2.msra.mxu0 0.0
    %129 = vmatprep.mubr.f32.mxu0 0.0
    %130 = vmatmul.mubr.f32.gmra.mxu0 %v59
    %v131 = vpop.f32.mrf.mxu0
    %v132 = vadd.f32 %v55, %v131
    %v133 = vpop.f32.mrf.mxu0
    %134 = vdwg.mxu0
    %v135 = vld [vmem:[%s3] sm:$0xff]
    %v136 = vld [vmem:[%s3 + $0x8] sm:$0xff]
    %v137 = vld [vmem:[%s3 + $0x10] sm:$0xff]
    %v138 = vld [vmem:[%s3 + $0x18] sm:$0xff]
    %v139 = vld [vmem:[%s4] sm:$0x1]
    %v141 = vlaneseq
    %v142 = vshrl.u32 %v141, 7
    %v143 = vsub.s32 0, %v142
    %v144 = vrot.slane %v139, %v143
    %vm146 = vcmask 261120
    %v148 = vsel %vm146, %v132, 0
    %150 = vmatprep.subr.mxu0 0.0
    %151 = vmatpush1.msra.mxu0 0.0
    %152 = vmatprep.subr.mxu0 0.0
    %153 = vmatpush1.msra.mxu0 0.0
    %154 = vmatprep.subr.mxu0 0.0
    %155 = vmatpush1.msra.mxu0 0.0
    %156 = vmatprep.subr.mxu0 0.0
    %157 = vmatpush1.msra.mxu0 0.0
    %158 = vmatprep.subr.mxu0 0.0
    %159 = vmatpush1.msra.mxu0 0.0
    %160 = vmatprep.subr.mxu0 0.0
    %161 = vmatpush1.msra.mxu0 0.0
    %162 = vmatprep.subr.mxu0 0.0
    %163 = vmatpush1.msra.mxu0 0.0
    %164 = vmatprep.subr.mxu0 0.0
    %165 = vmatpush1.msra.mxu0 0.0
    %166 = vmatprep.subr.mxu0 0.0
    %167 = vmatpush1.msra.mxu0 0.0
    %168 = vmatprep.subr.mxu0 0.0
    %169 = vmatpush1.msra.mxu0 0.0
    %170 = vmatprep.subr.mxu0 0.0
    %171 = vmatpush1.msra.mxu0 0.0
    %172 = vmatprep.subr.mxu0 0.0
    %173 = vmatpush1.msra.mxu0 0.0
    %174 = vmatprep.subr.mxu0 0.0
    %175 = vmatpush1.msra.mxu0 %v138
    %176 = vmatprep.subr.mxu0 0.0
    %177 = vmatpush1.msra.mxu0 %v137
    %178 = vmatprep.subr.mxu0 0.0
    %179 = vmatpush1.msra.mxu0 %v136
    %180 = vmatprep.subr.mxu0 0.0
    %181 = vmatpush1.msra.mxu0 %v135
    %182 = vmatprep.subr.mxu0 0.0
    %183 = vmatpush2.msra.mxu0 0.0
    %184 = vmatprep.subr.mxu0 0.0
    %185 = vmatpush2.msra.mxu0 0.0
    %186 = vmatprep.subr.mxu0 0.0
    %187 = vmatpush2.msra.mxu0 0.0
    %188 = vmatprep.subr.mxu0 0.0
    %189 = vmatpush2.msra.mxu0 0.0
    %190 = vmatprep.subr.mxu0 0.0
    %191 = vmatpush2.msra.mxu0 0.0
    %192 = vmatprep.subr.mxu0 0.0
    %193 = vmatpush2.msra.mxu0 0.0
    %194 = vmatprep.subr.mxu0 0.0
    %195 = vmatpush2.msra.mxu0 0.0
    %196 = vmatprep.subr.mxu0 0.0
    %197 = vmatpush2.msra.mxu0 0.0
    %198 = vmatprep.subr.mxu0 0.0
    %199 = vmatpush2.msra.mxu0 0.0
    %200 = vmatprep.subr.mxu0 0.0
    %201 = vmatpush2.msra.mxu0 0.0
    %202 = vmatprep.subr.mxu0 0.0
    %203 = vmatpush2.msra.mxu0 0.0
    %204 = vmatprep.subr.mxu0 0.0
    %205 = vmatpush2.msra.mxu0 0.0
    %206 = vmatprep.subr.mxu0 0.0
    %207 = vmatpush2.msra.mxu0 0.0
    %208 = vmatprep.subr.mxu0 0.0
    %209 = vmatpush2.msra.mxu0 0.0
    %210 = vmatprep.subr.mxu0 0.0
    %211 = vmatpush2.msra.mxu0 0.0
    %212 = vmatprep.subr.mxu0 0.0
    %213 = vmatpush2.msra.mxu0 0.0
    %214 = vmatprep.mubr.f32.mxu0 0.0
    %215 = vmatmul.mubr.f32.gmra.mxu0 %v148
    %v216 = vpop.f32.mrf.mxu0
    %v217 = vadd.f32 %v144, %v216
    %v218 = vpop.f32.mrf.mxu0
    %219 = vdwg.mxu0
    %vm220 = vcmp.ne.f32.partialorder %v217, %v217
    %v221 = vsel %vm220, 0.0, %v217
    %v222 = vand.u32 2147483647, %v221
    %vm223 = vcmp.le.f32.partialorder %v222, 0.7853982
    %vm224 = vcmp.lt.s32.totalorder %v221, 0
    %v225 = vand.u32 %v221, 2139095040
    %v226 = vshrl.u32 %v225, 23
    %v227 = vsub.s32 %v226, 127
    %v228 = vand.u32 2147483647, %v221
    %v229 = vand.u32 %v228, 8388607
    %v230 = vor.u32 %v229, 8388608
    %v231 = vsub.s32 0, %v230
    %v232 = vadd.s32 %v227, 1
    %vm233 = vcmp.gt.s32.totalorder %v232, 0
    %v234 = vsel %vm233, %v232, 0
    %v235 = vshrl.u32 %v234, 5
    %v236 = vand.u32 %v234, 31
    %v237 = vsub.s32 32, %v236
    %v238 = vshrl.u32 683565275, %v237
    %v239 = vshll.u32 683565275, %v236
    %v240 = vshrl.u32 2475754826, %v237
    %v241 = vor.u32 %v239, %v240
    %v242 = vshll.u32 2475754826, %v236
    %v243 = vshrl.u32 2131351028, %v237
    %v244 = vor.u32 %v242, %v243
    %v245 = vshll.u32 2131351028, %v236
    %v246 = vshrl.u32 2102212464, %v237
    %v247 = vor.u32 %v245, %v246
    %v248 = vshll.u32 2102212464, %v236
    %v249 = vshrl.u32 920167782, %v237
    %v250 = vor.u32 %v248, %v249
    %v251 = vshll.u32 920167782, %v236
    %v252 = vshrl.u32 1326507024, %v237
    %v253 = vor.u32 %v251, %v252
    %vm254 = vcmp.lt.s32.totalorder %v235, 1
    %vm255 = vcmp.lt.s32.totalorder %v235, 2
    %vm256 = vcmp.lt.s32.totalorder %v235, 3
    %vm257 = vcmp.lt.s32.totalorder %v235, 4
    %v258 = vsel %vm254, %v238, %v241
    %v259 = vsel %vm257, %v247, 2102212464
    %v260 = vsel %vm256, %v244, %v259
    %v261 = vsel %vm255, %v258, %v260
    %v262 = vsel %vm254, %v241, %v244
    %v263 = vsel %vm257, %v250, 920167782
    %v264 = vsel %vm256, %v247, %v263
    %v265 = vsel %vm255, %v262, %v264
    %v266 = vsel %vm254, %v244, %v247
    %v267 = vsel %vm257, %v253, 1326507024
    %v268 = vsel %vm256, %v250, %v267
    %v269 = vsel %vm255, %v266, %v268
    %v270 = vshll.u32 %v230, 8
    %v271 = vmul.u32.u64.compose %v270, %v269
    %v272 = vextract.low.u32 %v271
    %v273 = vextract.high.u32 %v271
    %v274 = vmul.u32.u64.compose %v270, %v265
    %v275 = vextract.low.u32 %v274
    %v276 = vextract.high.u32 %v274
    %v277 = vmul.u32 %v270, %v261
    %v278 = vadd.s32 %v273, %v275
    %vm279 = vc.u32 %v273, %v275
    %v280 = vadd.s32 %v276, 1
    %v281 = vsel %vm279, %v280, %v276
    %v282 = vadd.s32 %v277, %v281
    %v283 = vadd.s32 %v282, 536870912
    %v284 = vshrl.u32 %v283, 30
    %v285 = vshll.u32 %v284, 30
    %v286 = vsub.s32 %v282, %v285
    %vm287 = vcmp.lt.s32.totalorder %v286, 0
    %v288 = vsub.s32 0, %v286
    %v289 = vsel %vm287, %v288, %v286
    %v290 = vclz %v289
    %v291 = vsub.s32 %v290, 2
    %vm292 = vcmp.gt.s32.totalorder 0, %v291
    %v293 = vsel %vm292, 0, %v291
    %v294 = vsub.s32 32, %v293
    %v295 = vshll.u32 %v286, %v293
    %v296 = vshrl.u32 %v278, %v294
    %v297 = vor.u32 %v295, %v296
    %v298 = vsub.s32 4294967266, %v293
    %v299 = vadd.s32 %v298, 127
    %v300 = vshll.u32 %v299, 23
    %v301 = vor.u32 4788187, %v300
    %v302 = vand.u32 2147483647, %v301
    %v304 = vcvt.s32.f32 %v297
    %v305 = vmul.f32 %v304, %v302
    %v306 = vxor.u32 %v305, 2147483648
    %v307 = vsel %vm224, %v306, %v305
    %v308 = vsub.s32 4, %v284
    %v309 = vsel %vm224, %v308, %v284
    %v310 = vsel %vm223, %v221, %v307
    %v311 = vsel %vm223, 0, %v309
    %v312 = vcosq.f32.pop %v310
    %v313 = vsinq.f32.pop %v310
    %vm314 = vweird.f32 %v221
    %v315 = vadd.s32 %v311, 3
    %v316 = vand.u32 %v315, 3
    %vm317 = vcmp.lt.s32.totalorder %v316, 2
    %vm318 = vcmp.eq.s32.totalorder %v316, 0
    %v319 = vxor.u32 %v313, 2147483648
    %v320 = vsel %vm318, %v312, %v319
    %vm321 = vcmp.eq.s32.totalorder %v316, 2
    %v322 = vxor.u32 %v312, 2147483648
    %v323 = vsel %vm321, %v322, %v313
    %v324 = vsel %vm317, %v320, %v323
    %v325 = vsel %vm314, nan, %v324
    %v326 = vand.u32 2147483647, %v221
    %vm327 = vcmp.le.f32.partialorder %v326, 0.7853982
    %vm328 = vcmp.lt.s32.totalorder %v221, 0
    %v329 = vand.u32 %v221, 2139095040
    %v330 = vshrl.u32 %v329, 23
    %v331 = vsub.s32 %v330, 127
    %v332 = vand.u32 2147483647, %v221
    %v333 = vand.u32 %v332, 8388607
    %v334 = vor.u32 %v333, 8388608
    %v335 = vsub.s32 0, %v334
    %v336 = vadd.s32 %v331, 1
    %vm337 = vcmp.gt.s32.totalorder %v336, 0
    %v338 = vsel %vm337, %v336, 0
    %v339 = vshrl.u32 %v338, 5
    %v340 = vand.u32 %v338, 31
    %v341 = vsub.s32 32, %v340
    %v342 = vshrl.u32 683565275, %v341
    %v343 = vshll.u32 683565275, %v340
    %v344 = vshrl.u32 2475754826, %v341
    %v345 = vor.u32 %v343, %v344
    %v346 = vshll.u32 2475754826, %v340
    %v347 = vshrl.u32 2131351028, %v341
    %v348 = vor.u32 %v346, %v347
    %v349 = vshll.u32 2131351028, %v340
    %v350 = vshrl.u32 2102212464, %v341
    %v351 = vor.u32 %v349, %v350
    %v352 = vshll.u32 2102212464, %v340
    %v353 = vshrl.u32 920167782, %v341
    %v354 = vor.u32 %v352, %v353
    %v355 = vshll.u32 920167782, %v340
    %v356 = vshrl.u32 1326507024, %v341
    %v357 = vor.u32 %v355, %v356
    %vm358 = vcmp.lt.s32.totalorder %v339, 1
    %vm359 = vcmp.lt.s32.totalorder %v339, 2
    %vm360 = vcmp.lt.s32.totalorder %v339, 3
    %vm361 = vcmp.lt.s32.totalorder %v339, 4
    %v362 = vsel %vm358, %v342, %v345
    %v363 = vsel %vm361, %v351, 2102212464
    %v364 = vsel %vm360, %v348, %v363
    %v365 = vsel %vm359, %v362, %v364
    %v366 = vsel %vm358, %v345, %v348
    %v367 = vsel %vm361, %v354, 920167782
    %v368 = vsel %vm360, %v351, %v367
    %v369 = vsel %vm359, %v366, %v368
    %v370 = vsel %vm358, %v348, %v351
    %v371 = vsel %vm361, %v357, 1326507024
    %v372 = vsel %vm360, %v354, %v371
    %v373 = vsel %vm359, %v370, %v372
    %v374 = vshll.u32 %v334, 8
    %v375 = vmul.u32.u64.compose %v374, %v373
    %v376 = vextract.low.u32 %v375
    %v377 = vextract.high.u32 %v375
    %v378 = vmul.u32.u64.compose %v374, %v369
    %v379 = vextract.low.u32 %v378
    %v380 = vextract.high.u32 %v378
    %v381 = vmul.u32 %v374, %v365
    %v382 = vadd.s32 %v377, %v379
    %vm383 = vc.u32 %v377, %v379
    %v384 = vadd.s32 %v380, 1
    %v385 = vsel %vm383, %v384, %v380
    %v386 = vadd.s32 %v381, %v385
    %v387 = vadd.s32 %v386, 536870912
    %v388 = vshrl.u32 %v387, 30
    %v389 = vshll.u32 %v388, 30
    %v390 = vsub.s32 %v386, %v389
    %vm391 = vcmp.lt.s32.totalorder %v390, 0
    %v392 = vsub.s32 0, %v390
    %v393 = vsel %vm391, %v392, %v390
    %v394 = vclz %v393
    %v395 = vsub.s32 %v394, 2
    %vm396 = vcmp.gt.s32.totalorder 0, %v395
    %v397 = vsel %vm396, 0, %v395
    %v398 = vsub.s32 32, %v397
    %v399 = vshll.u32 %v390, %v397
    %v400 = vshrl.u32 %v382, %v398
    %v401 = vor.u32 %v399, %v400
    %v402 = vsub.s32 4294967266, %v397
    %v403 = vadd.s32 %v402, 127
    %v404 = vshll.u32 %v403, 23
    %v405 = vor.u32 4788187, %v404
    %v406 = vand.u32 2147483647, %v405
    %v408 = vcvt.s32.f32 %v401
    %v409 = vmul.f32 %v408, %v406
    %v410 = vxor.u32 %v409, 2147483648
    %v411 = vsel %vm328, %v410, %v409
    %v412 = vsub.s32 4, %v388
    %v413 = vsel %vm328, %v412, %v388
    %v414 = vsel %vm327, %v221, %v411
    %v415 = vsel %vm327, 0, %v413
    %v416 = vcosq.f32.pop %v414
    %v417 = vsinq.f32.pop %v414
    %vm418 = vweird.f32 %v221
    %v419 = vand.u32 %v415, 3
    %vm420 = vcmp.lt.s32.totalorder %v419, 2
    %vm421 = vcmp.eq.s32.totalorder %v419, 0
    %v422 = vxor.u32 %v417, 2147483648
    %v423 = vsel %vm421, %v416, %v422
    %vm424 = vcmp.eq.s32.totalorder %v419, 2
    %v425 = vxor.u32 %v416, 2147483648
    %v426 = vsel %vm424, %v425, %v417
    %v427 = vsel %vm420, %v423, %v426
    %v428 = vsel %vm418, nan, %v427
    %v429 = vmul.f32 %v217, 0.5
    %v430 = vmul.f32 %v217, 0.70710677
    %v431 = verf.f32.pop %v430
    %v432 = vadd.f32 %v431, 1.0
    %v433 = vmul.f32 %v429, %v432
    %vm434 = vcmp.ne.f32.partialorder %v325, %v325
    %v435 = vsel %vm434, 0.0, %v325
    %vm436 = vcmp.ne.f32.partialorder %v428, %v428
    %v437 = vsel %vm436, 0.0, %v428
    %vm438 = vcmp.ne.f32.partialorder %v433, %v433
    %v439 = vsel %vm438, 0.0, %v433
    %v440 = vld [vmem:[#allocation2] sm:$0xff]
    %v441 = vld [vmem:[#allocation2 + $0x8] sm:$0xff]
    %v442 = vld [vmem:[#allocation2 + $0x10] sm:$0xff]
    %v443 = vld [vmem:[#allocation2 + $0x18] sm:$0xff]
    %v444 = vld [vmem:[%s6] sm:$0x1]
    %446 = vrot.lane.b32.xlu0 %v437, 120
    %v447 = vpop.permute.xlu0 %446
    %vm448 = vcmask 64512
    %v449 = vsel %vm448, %v447, 0
    %451 = vmatprep.subr.mxu0 0.0
    %452 = vmatpush1.msra.mxu0 0.0
    %453 = vmatprep.subr.mxu0 0.0
    %454 = vmatpush1.msra.mxu0 0.0
    %455 = vmatprep.subr.mxu0 0.0
    %456 = vmatpush1.msra.mxu0 0.0
    %457 = vmatprep.subr.mxu0 0.0
    %458 = vmatpush1.msra.mxu0 0.0
    %459 = vmatprep.subr.mxu0 0.0
    %460 = vmatpush1.msra.mxu0 0.0
    %461 = vmatprep.subr.mxu0 0.0
    %462 = vmatpush1.msra.mxu0 0.0
    %463 = vmatprep.subr.mxu0 0.0
    %464 = vmatpush1.msra.mxu0 0.0
    %465 = vmatprep.subr.mxu0 0.0
    %466 = vmatpush1.msra.mxu0 0.0
    %467 = vmatprep.subr.mxu0 0.0
    %468 = vmatpush1.msra.mxu0 0.0
    %469 = vmatprep.subr.mxu0 0.0
    %470 = vmatpush1.msra.mxu0 0.0
    %471 = vmatprep.subr.mxu0 0.0
    %472 = vmatpush1.msra.mxu0 0.0
    %473 = vmatprep.subr.mxu0 0.0
    %474 = vmatpush1.msra.mxu0 0.0
    %475 = vmatprep.subr.mxu0 0.0
    %476 = vmatpush1.msra.mxu0 0.0
    %477 = vmatprep.subr.mxu0 0.0
    %478 = vmatpush1.msra.mxu0 0.0
    %479 = vmatprep.subr.mxu0 0.0
    %480 = vmatpush1.msra.mxu0 0.0
    %481 = vmatprep.subr.mxu0 0.0
    %482 = vmatpush1.msra.mxu0 %v441
    %483 = vmatprep.subr.mxu0 0.0
    %484 = vmatpush2.msra.mxu0 0.0
    %485 = vmatprep.subr.mxu0 0.0
    %486 = vmatpush2.msra.mxu0 0.0
    %487 = vmatprep.subr.mxu0 0.0
    %488 = vmatpush2.msra.mxu0 0.0
    %489 = vmatprep.subr.mxu0 0.0
    %490 = vmatpush2.msra.mxu0 0.0
    %491 = vmatprep.subr.mxu0 0.0
    %492 = vmatpush2.msra.mxu0 0.0
    %493 = vmatprep.subr.mxu0 0.0
    %494 = vmatpush2.msra.mxu0 0.0
    %495 = vmatprep.subr.mxu0 0.0
    %496 = vmatpush2.msra.mxu0 0.0
    %497 = vmatprep.subr.mxu0 0.0
    %498 = vmatpush2.msra.mxu0 0.0
    %499 = vmatprep.subr.mxu0 0.0
    %500 = vmatpush2.msra.mxu0 0.0
    %501 = vmatprep.subr.mxu0 0.0
    %502 = vmatpush2.msra.mxu0 0.0
    %503 = vmatprep.subr.mxu0 0.0
    %504 = vmatpush2.msra.mxu0 0.0
    %505 = vmatprep.subr.mxu0 0.0
    %506 = vmatpush2.msra.mxu0 0.0
    %507 = vmatprep.subr.mxu0 0.0
    %508 = vmatpush2.msra.mxu0 0.0
    %509 = vmatprep.subr.mxu0 0.0
    %510 = vmatpush2.msra.mxu0 0.0
    %511 = vmatprep.subr.mxu0 0.0
    %512 = vmatpush2.msra.mxu0 0.0
    %513 = vmatprep.subr.mxu0 0.0
    %514 = vmatpush2.msra.mxu0 0.0
    %515 = vmatprep.mubr.f32.mxu0 0.0
    %516 = vmatmul.mubr.f32.gmra.mxu0 %v449
    %v517 = vpop.f32.mrf.mxu0
    %v518 = vadd.f32 0.0, %v517
    %v519 = vpop.f32.mrf.mxu0
    %520 = vdwg.mxu0
    %v522 = vsel %vm448, %v435, 0
    %524 = vmatprep.subr.mxu0 0.0
    %525 = vmatpush1.msra.mxu0 0.0
    %526 = vmatprep.subr.mxu0 0.0
    %527 = vmatpush1.msra.mxu0 0.0
    %528 = vmatprep.subr.mxu0 0.0
    %529 = vmatpush1.msra.mxu0 0.0
    %530 = vmatprep.subr.mxu0 0.0
    %531 = vmatpush1.msra.mxu0 0.0
    %532 = vmatprep.subr.mxu0 0.0
    %533 = vmatpush1.msra.mxu0 0.0
    %534 = vmatprep.subr.mxu0 0.0
    %535 = vmatpush1.msra.mxu0 0.0
    %536 = vmatprep.subr.mxu0 0.0
    %537 = vmatpush1.msra.mxu0 0.0
    %538 = vmatprep.subr.mxu0 0.0
    %539 = vmatpush1.msra.mxu0 0.0
    %540 = vmatprep.subr.mxu0 0.0
    %541 = vmatpush1.msra.mxu0 0.0
    %542 = vmatprep.subr.mxu0 0.0
    %543 = vmatpush1.msra.mxu0 0.0
    %544 = vmatprep.subr.mxu0 0.0
    %545 = vmatpush1.msra.mxu0 0.0
    %546 = vmatprep.subr.mxu0 0.0
    %547 = vmatpush1.msra.mxu0 0.0
    %548 = vmatprep.subr.mxu0 0.0
    %549 = vmatpush1.msra.mxu0 0.0
    %550 = vmatprep.subr.mxu0 0.0
    %551 = vmatpush1.msra.mxu0 0.0
    %552 = vmatprep.subr.mxu0 0.0
    %553 = vmatpush1.msra.mxu0 0.0
    %554 = vmatprep.subr.mxu0 0.0
    %555 = vmatpush1.msra.mxu0 %v440
    %556 = vmatprep.subr.mxu0 0.0
    %557 = vmatpush2.msra.mxu0 0.0
    %558 = vmatprep.subr.mxu0 0.0
    %559 = vmatpush2.msra.mxu0 0.0
    %560 = vmatprep.subr.mxu0 0.0
    %561 = vmatpush2.msra.mxu0 0.0
    %562 = vmatprep.subr.mxu0 0.0
    %563 = vmatpush2.msra.mxu0 0.0
    %564 = vmatprep.subr.mxu0 0.0
    %565 = vmatpush2.msra.mxu0 0.0
    %566 = vmatprep.subr.mxu0 0.0
    %567 = vmatpush2.msra.mxu0 0.0
    %568 = vmatprep.subr.mxu0 0.0
    %569 = vmatpush2.msra.mxu0 0.0
    %570 = vmatprep.subr.mxu0 0.0
    %571 = vmatpush2.msra.mxu0 0.0
    %572 = vmatprep.subr.mxu0 0.0
    %573 = vmatpush2.msra.mxu0 0.0
    %574 = vmatprep.subr.mxu0 0.0
    %575 = vmatpush2.msra.mxu0 0.0
    %576 = vmatprep.subr.mxu0 0.0
    %577 = vmatpush2.msra.mxu0 0.0
    %578 = vmatprep.subr.mxu0 0.0
    %579 = vmatpush2.msra.mxu0 0.0
    %580 = vmatprep.subr.mxu0 0.0
    %581 = vmatpush2.msra.mxu0 0.0
    %582 = vmatprep.subr.mxu0 0.0
    %583 = vmatpush2.msra.mxu0 0.0
    %584 = vmatprep.subr.mxu0 0.0
    %585 = vmatpush2.msra.mxu0 0.0
    %586 = vmatprep.subr.mxu0 0.0
    %587 = vmatpush2.msra.mxu0 0.0
    %588 = vmatprep.mubr.f32.mxu0 0.0
    %589 = vmatmul.mubr.f32.gmra.mxu0 %v522
    %v590 = vpop.f32.mrf.mxu0
    %v591 = vadd.f32 %v518, %v590
    %v592 = vpop.f32.mrf.mxu0
    %593 = vdwg.mxu0
    %595 = vrot.lane.b32.xlu0 %v439, 112
    %v596 = vpop.permute.xlu0 %595
    %vm597 = vcmask 130048
    %v598 = vsel %vm597, %v596, 0
    %600 = vmatprep.subr.mxu0 0.0
    %601 = vmatpush1.msra.mxu0 0.0
    %602 = vmatprep.subr.mxu0 0.0
    %603 = vmatpush1.msra.mxu0 0.0
    %604 = vmatprep.subr.mxu0 0.0
    %605 = vmatpush1.msra.mxu0 0.0
    %606 = vmatprep.subr.mxu0 0.0
    %607 = vmatpush1.msra.mxu0 0.0
    %608 = vmatprep.subr.mxu0 0.0
    %609 = vmatpush1.msra.mxu0 0.0
    %610 = vmatprep.subr.mxu0 0.0
    %611 = vmatpush1.msra.mxu0 0.0
    %612 = vmatprep.subr.mxu0 0.0
    %613 = vmatpush1.msra.mxu0 0.0
    %614 = vmatprep.subr.mxu0 0.0
    %615 = vmatpush1.msra.mxu0 0.0
    %616 = vmatprep.subr.mxu0 0.0
    %617 = vmatpush1.msra.mxu0 0.0
    %618 = vmatprep.subr.mxu0 0.0
    %619 = vmatpush1.msra.mxu0 0.0
    %620 = vmatprep.subr.mxu0 0.0
    %621 = vmatpush1.msra.mxu0 0.0
    %622 = vmatprep.subr.mxu0 0.0
    %623 = vmatpush1.msra.mxu0 0.0
    %624 = vmatprep.subr.mxu0 0.0
    %625 = vmatpush1.msra.mxu0 0.0
    %626 = vmatprep.subr.mxu0 0.0
    %627 = vmatpush1.msra.mxu0 0.0
    %628 = vmatprep.subr.mxu0 0.0
    %629 = vmatpush1.msra.mxu0 %v443
    %630 = vmatprep.subr.mxu0 0.0
    %631 = vmatpush1.msra.mxu0 %v442
    %632 = vmatprep.subr.mxu0 0.0
    %633 = vmatpush2.msra.mxu0 0.0
    %634 = vmatprep.subr.mxu0 0.0
    %635 = vmatpush2.msra.mxu0 0.0
    %636 = vmatprep.subr.mxu0 0.0
    %637 = vmatpush2.msra.mxu0 0.0
    %638 = vmatprep.subr.mxu0 0.0
    %639 = vmatpush2.msra.mxu0 0.0
    %640 = vmatprep.subr.mxu0 0.0
    %641 = vmatpush2.msra.mxu0 0.0
    %642 = vmatprep.subr.mxu0 0.0
    %643 = vmatpush2.msra.mxu0 0.0
    %644 = vmatprep.subr.mxu0 0.0
    %645 = vmatpush2.msra.mxu0 0.0
    %646 = vmatprep.subr.mxu0 0.0
    %647 = vmatpush2.msra.mxu0 0.0
    %648 = vmatprep.subr.mxu0 0.0
    %649 = vmatpush2.msra.mxu0 0.0
    %650 = vmatprep.subr.mxu0 0.0
    %651 = vmatpush2.msra.mxu0 0.0
    %652 = vmatprep.subr.mxu0 0.0
    %653 = vmatpush2.msra.mxu0 0.0
    %654 = vmatprep.subr.mxu0 0.0
    %655 = vmatpush2.msra.mxu0 0.0
    %656 = vmatprep.subr.mxu0 0.0
    %657 = vmatpush2.msra.mxu0 0.0
    %658 = vmatprep.subr.mxu0 0.0
    %659 = vmatpush2.msra.mxu0 0.0
    %660 = vmatprep.subr.mxu0 0.0
    %661 = vmatpush2.msra.mxu0 0.0
    %662 = vmatprep.subr.mxu0 0.0
    %663 = vmatpush2.msra.mxu0 0.0
    %664 = vmatprep.mubr.f32.mxu0 0.0
    %665 = vmatmul.mubr.f32.gmra.mxu0 %v598
    %v666 = vpop.f32.mrf.mxu0
    %v667 = vadd.f32 0.0, %v666
    %v668 = vpop.f32.mrf.mxu0
    %669 = vdwg.mxu0
    %v670 = vadd.f32 %v591, %v667
    %v672 = vlaneseq
    %v673 = vshrl.u32 %v672, 7
    %v674 = vsub.s32 0, %v673
    %v675 = vrot.slane %v444, %v674
    %v677 = vadd.f32 %v670, %v675
    %vm678 = vcmp.ne.f32.partialorder %v677, %v677
    %v679 = vsel %vm678, 0.0, %v677
    %v680 = vand.u32 2147483647, %v679
    %vm681 = vcmp.le.f32.partialorder %v680, 0.7853982
    %vm682 = vcmp.lt.s32.totalorder %v679, 0
    %v683 = vand.u32 %v679, 2139095040
    %v684 = vshrl.u32 %v683, 23
    %v685 = vsub.s32 %v684, 127
    %v686 = vand.u32 2147483647, %v679
    %v687 = vand.u32 %v686, 8388607
    %v688 = vor.u32 %v687, 8388608
    %v689 = vsub.s32 0, %v688
    %v690 = vadd.s32 %v685, 1
    %vm691 = vcmp.gt.s32.totalorder %v690, 0
    %v692 = vsel %vm691, %v690, 0
    %v693 = vshrl.u32 %v692, 5
    %v694 = vand.u32 %v692, 31
    %v695 = vsub.s32 32, %v694
    %v696 = vshrl.u32 683565275, %v695
    %v697 = vshll.u32 683565275, %v694
    %v698 = vshrl.u32 2475754826, %v695
    %v699 = vor.u32 %v697, %v698
    %v700 = vshll.u32 2475754826, %v694
    %v701 = vshrl.u32 2131351028, %v695
    %v702 = vor.u32 %v700, %v701
    %v703 = vshll.u32 2131351028, %v694
    %v704 = vshrl.u32 2102212464, %v695
    %v705 = vor.u32 %v703, %v704
    %v706 = vshll.u32 2102212464, %v694
    %v707 = vshrl.u32 920167782, %v695
    %v708 = vor.u32 %v706, %v707
    %v709 = vshll.u32 920167782, %v694
    %v710 = vshrl.u32 1326507024, %v695
    %v711 = vor.u32 %v709, %v710
    %vm712 = vcmp.lt.s32.totalorder %v693, 1
    %vm713 = vcmp.lt.s32.totalorder %v693, 2
    %vm714 = vcmp.lt.s32.totalorder %v693, 3
    %vm715 = vcmp.lt.s32.totalorder %v693, 4
    %v716 = vsel %vm712, %v696, %v699
    %v717 = vsel %vm715, %v705, 2102212464
    %v718 = vsel %vm714, %v702, %v717
    %v719 = vsel %vm713, %v716, %v718
    %v720 = vsel %vm712, %v699, %v702
    %v721 = vsel %vm715, %v708, 920167782
    %v722 = vsel %vm714, %v705, %v721
    %v723 = vsel %vm713, %v720, %v722
    %v724 = vsel %vm712, %v702, %v705
    %v725 = vsel %vm715, %v711, 1326507024
    %v726 = vsel %vm714, %v708, %v725
    %v727 = vsel %vm713, %v724, %v726
    %v728 = vshll.u32 %v688, 8
    %v729 = vmul.u32.u64.compose %v728, %v727
    %v730 = vextract.low.u32 %v729
    %v731 = vextract.high.u32 %v729
    %v732 = vmul.u32.u64.compose %v728, %v723
    %v733 = vextract.low.u32 %v732
    %v734 = vextract.high.u32 %v732
    %v735 = vmul.u32 %v728, %v719
    %v736 = vadd.s32 %v731, %v733
    %vm737 = vc.u32 %v731, %v733
    %v738 = vadd.s32 %v734, 1
    %v739 = vsel %vm737, %v738, %v734
    %v740 = vadd.s32 %v735, %v739
    %v741 = vadd.s32 %v740, 536870912
    %v742 = vshrl.u32 %v741, 30
    %v743 = vshll.u32 %v742, 30
    %v744 = vsub.s32 %v740, %v743
    %vm745 = vcmp.lt.s32.totalorder %v744, 0
    %v746 = vsub.s32 0, %v744
    %v747 = vsel %vm745, %v746, %v744
    %v748 = vclz %v747
    %v749 = vsub.s32 %v748, 2
    %vm750 = vcmp.gt.s32.totalorder 0, %v749
    %v751 = vsel %vm750, 0, %v749
    %v752 = vsub.s32 32, %v751
    %v753 = vshll.u32 %v744, %v751
    %v754 = vshrl.u32 %v736, %v752
    %v755 = vor.u32 %v753, %v754
    %v756 = vsub.s32 4294967266, %v751
    %v757 = vadd.s32 %v756, 127
    %v758 = vshll.u32 %v757, 23
    %v759 = vor.u32 4788187, %v758
    %v760 = vand.u32 2147483647, %v759
    %v762 = vcvt.s32.f32 %v755
    %v763 = vmul.f32 %v762, %v760
    %v764 = vxor.u32 %v763, 2147483648
    %v765 = vsel %vm682, %v764, %v763
    %v766 = vsub.s32 4, %v742
    %v767 = vsel %vm682, %v766, %v742
    %v768 = vsel %vm681, %v679, %v765
    %v769 = vsel %vm681, 0, %v767
    %v770 = vcosq.f32.pop %v768
    %v771 = vsinq.f32.pop %v768
    %vm772 = vweird.f32 %v679
    %v773 = vadd.s32 %v769, 3
    %v774 = vand.u32 %v773, 3
    %vm775 = vcmp.lt.s32.totalorder %v774, 2
    %vm776 = vcmp.eq.s32.totalorder %v774, 0
    %v777 = vxor.u32 %v771, 2147483648
    %v778 = vsel %vm776, %v770, %v777
    %vm779 = vcmp.eq.s32.totalorder %v774, 2
    %v780 = vxor.u32 %v770, 2147483648
    %v781 = vsel %vm779, %v780, %v771
    %v782 = vsel %vm775, %v778, %v781
    %v783 = vsel %vm772, nan, %v782
    %v784 = vand.u32 2147483647, %v679
    %vm785 = vcmp.le.f32.partialorder %v784, 0.7853982
    %vm786 = vcmp.lt.s32.totalorder %v679, 0
    %v787 = vand.u32 %v679, 2139095040
    %v788 = vshrl.u32 %v787, 23
    %v789 = vsub.s32 %v788, 127
    %v790 = vand.u32 2147483647, %v679
    %v791 = vand.u32 %v790, 8388607
    %v792 = vor.u32 %v791, 8388608
    %v793 = vsub.s32 0, %v792
    %v794 = vadd.s32 %v789, 1
    %vm795 = vcmp.gt.s32.totalorder %v794, 0
    %v796 = vsel %vm795, %v794, 0
    %v797 = vshrl.u32 %v796, 5
    %v798 = vand.u32 %v796, 31
    %v799 = vsub.s32 32, %v798
    %v800 = vshrl.u32 683565275, %v799
    %v801 = vshll.u32 683565275, %v798
    %v802 = vshrl.u32 2475754826, %v799
    %v803 = vor.u32 %v801, %v802
    %v804 = vshll.u32 2475754826, %v798
    %v805 = vshrl.u32 2131351028, %v799
    %v806 = vor.u32 %v804, %v805
    %v807 = vshll.u32 2131351028, %v798
    %v808 = vshrl.u32 2102212464, %v799
    %v809 = vor.u32 %v807, %v808
    %v810 = vshll.u32 2102212464, %v798
    %v811 = vshrl.u32 920167782, %v799
    %v812 = vor.u32 %v810, %v811
    %v813 = vshll.u32 920167782, %v798
    %v814 = vshrl.u32 1326507024, %v799
    %v815 = vor.u32 %v813, %v814
    %vm816 = vcmp.lt.s32.totalorder %v797, 1
    %vm817 = vcmp.lt.s32.totalorder %v797, 2
    %vm818 = vcmp.lt.s32.totalorder %v797, 3
    %vm819 = vcmp.lt.s32.totalorder %v797, 4
    %v820 = vsel %vm816, %v800, %v803
    %v821 = vsel %vm819, %v809, 2102212464
    %v822 = vsel %vm818, %v806, %v821
    %v823 = vsel %vm817, %v820, %v822
    %v824 = vsel %vm816, %v803, %v806
    %v825 = vsel %vm819, %v812, 920167782
    %v826 = vsel %vm818, %v809, %v825
    %v827 = vsel %vm817, %v824, %v826
    %v828 = vsel %vm816, %v806, %v809
    %v829 = vsel %vm819, %v815, 1326507024
    %v830 = vsel %vm818, %v812, %v829
    %v831 = vsel %vm817, %v828, %v830
    %v832 = vshll.u32 %v792, 8
    %v833 = vmul.u32.u64.compose %v832, %v831
    %v834 = vextract.low.u32 %v833
    %v835 = vextract.high.u32 %v833
    %v836 = vmul.u32.u64.compose %v832, %v827
    %v837 = vextract.low.u32 %v836
    %v838 = vextract.high.u32 %v836
    %v839 = vmul.u32 %v832, %v823
    %v840 = vadd.s32 %v835, %v837
    %vm841 = vc.u32 %v835, %v837
    %v842 = vadd.s32 %v838, 1
    %v843 = vsel %vm841, %v842, %v838
    %v844 = vadd.s32 %v839, %v843
    %v845 = vadd.s32 %v844, 536870912
    %v846 = vshrl.u32 %v845, 30
    %v847 = vshll.u32 %v846, 30
    %v848 = vsub.s32 %v844, %v847
    %vm849 = vcmp.lt.s32.totalorder %v848, 0
    %v850 = vsub.s32 0, %v848
    %v851 = vsel %vm849, %v850, %v848
    %v852 = vclz %v851
    %v853 = vsub.s32 %v852, 2
    %vm854 = vcmp.gt.s32.totalorder 0, %v853
    %v855 = vsel %vm854, 0, %v853
    %v856 = vsub.s32 32, %v855
    %v857 = vshll.u32 %v848, %v855
    %v858 = vshrl.u32 %v840, %v856
    %v859 = vor.u32 %v857, %v858
    %v860 = vsub.s32 4294967266, %v855
    %v861 = vadd.s32 %v860, 127
    %v862 = vshll.u32 %v861, 23
    %v863 = vor.u32 4788187, %v862
    %v864 = vand.u32 2147483647, %v863
    %v866 = vcvt.s32.f32 %v859
    %v867 = vmul.f32 %v866, %v864
    %v868 = vxor.u32 %v867, 2147483648
    %v869 = vsel %vm786, %v868, %v867
    %v870 = vsub.s32 4, %v846
    %v871 = vsel %vm786, %v870, %v846
    %v872 = vsel %vm785, %v679, %v869
    %v873 = vsel %vm785, 0, %v871
    %v874 = vcosq.f32.pop %v872
    %v875 = vsinq.f32.pop %v872
    %vm876 = vweird.f32 %v679
    %v877 = vand.u32 %v873, 3
    %vm878 = vcmp.lt.s32.totalorder %v877, 2
    %vm879 = vcmp.eq.s32.totalorder %v877, 0
    %v880 = vxor.u32 %v875, 2147483648
    %v881 = vsel %vm879, %v874, %v880
    %vm882 = vcmp.eq.s32.totalorder %v877, 2
    %v883 = vxor.u32 %v874, 2147483648
    %v884 = vsel %vm882, %v883, %v875
    %v885 = vsel %vm878, %v881, %v884
    %v886 = vsel %vm876, nan, %v885
    %v887 = vmul.f32 %v677, 0.5
    %v888 = vmul.f32 %v677, 0.70710677
    %v889 = verf.f32.pop %v888
    %v890 = vadd.f32 %v889, 1.0
    %v891 = vmul.f32 %v887, %v890
    %vm892 = vcmp.ne.f32.partialorder %v783, %v783
    %v893 = vsel %vm892, 0.0, %v783
    %vm894 = vcmp.ne.f32.partialorder %v886, %v886
    %v895 = vsel %vm894, 0.0, %v886
    %vm896 = vcmp.ne.f32.partialorder %v891, %v891
    %v897 = vsel %vm896, 0.0, %v891
    %v898 = vld [vmem:[%s7] sm:$0xff]
    %v899 = vld [vmem:[%s7 + $0x8] sm:$0xff]
    %v900 = vld [vmem:[%s7 + $0x10] sm:$0xff]
    %v901 = vld [vmem:[%s7 + $0x18] sm:$0xff]
    %903 = vrot.lane.b32.xlu0 %v895, 120
    %v904 = vpop.permute.xlu0 %903
    %v905 = vsel %vm448, %v904, 0
    %907 = vmatprep.subr.mxu0 0.0
    %908 = vmatpush1.msra.mxu0 0.0
    %909 = vmatprep.subr.mxu0 0.0
    %910 = vmatpush1.msra.mxu0 0.0
    %911 = vmatprep.subr.mxu0 0.0
    %912 = vmatpush1.msra.mxu0 0.0
    %913 = vmatprep.subr.mxu0 0.0
    %914 = vmatpush1.msra.mxu0 0.0
    %915 = vmatprep.subr.mxu0 0.0
    %916 = vmatpush1.msra.mxu0 0.0
    %917 = vmatprep.subr.mxu0 0.0
    %918 = vmatpush1.msra.mxu0 0.0
    %919 = vmatprep.subr.mxu0 0.0
    %920 = vmatpush1.msra.mxu0 0.0
    %921 = vmatprep.subr.mxu0 0.0
    %922 = vmatpush1.msra.mxu0 0.0
    %923 = vmatprep.subr.mxu0 0.0
    %924 = vmatpush1.msra.mxu0 0.0
    %925 = vmatprep.subr.mxu0 0.0
    %926 = vmatpush1.msra.mxu0 0.0
    %927 = vmatprep.subr.mxu0 0.0
    %928 = vmatpush1.msra.mxu0 0.0
    %929 = vmatprep.subr.mxu0 0.0
    %930 = vmatpush1.msra.mxu0 0.0
    %931 = vmatprep.subr.mxu0 0.0
    %932 = vmatpush1.msra.mxu0 0.0
    %933 = vmatprep.subr.mxu0 0.0
    %934 = vmatpush1.msra.mxu0 0.0
    %935 = vmatprep.subr.mxu0 0.0
    %936 = vmatpush1.msra.mxu0 0.0
    %937 = vmatprep.subr.mxu0 0.0
    %938 = vmatpush1.msra.mxu0 %v899
    %939 = vmatprep.subr.mxu0 0.0
    %940 = vmatpush2.msra.mxu0 0.0
    %941 = vmatprep.subr.mxu0 0.0
    %942 = vmatpush2.msra.mxu0 0.0
    %943 = vmatprep.subr.mxu0 0.0
    %944 = vmatpush2.msra.mxu0 0.0
    %945 = vmatprep.subr.mxu0 0.0
    %946 = vmatpush2.msra.mxu0 0.0
    %947 = vmatprep.subr.mxu0 0.0
    %948 = vmatpush2.msra.mxu0 0.0
    %949 = vmatprep.subr.mxu0 0.0
    %950 = vmatpush2.msra.mxu0 0.0
    %951 = vmatprep.subr.mxu0 0.0
    %952 = vmatpush2.msra.mxu0 0.0
    %953 = vmatprep.subr.mxu0 0.0
    %954 = vmatpush2.msra.mxu0 0.0
    %955 = vmatprep.subr.mxu0 0.0
    %956 = vmatpush2.msra.mxu0 0.0
    %957 = vmatprep.subr.mxu0 0.0
    %958 = vmatpush2.msra.mxu0 0.0
    %959 = vmatprep.subr.mxu0 0.0
    %960 = vmatpush2.msra.mxu0 0.0
    %961 = vmatprep.subr.mxu0 0.0
    %962 = vmatpush2.msra.mxu0 0.0
    %963 = vmatprep.subr.mxu0 0.0
    %964 = vmatpush2.msra.mxu0 0.0
    %965 = vmatprep.subr.mxu0 0.0
    %966 = vmatpush2.msra.mxu0 0.0
    %967 = vmatprep.subr.mxu0 0.0
    %968 = vmatpush2.msra.mxu0 0.0
    %969 = vmatprep.subr.mxu0 0.0
    %970 = vmatpush2.msra.mxu0 0.0
    %971 = vmatprep.mubr.f32.mxu0 0.0
    %972 = vmatmul.mubr.f32.gmra.mxu0 %v905
    %v973 = vpop.f32.mrf.mxu0
    %v974 = vadd.f32 0.0, %v973
    %v975 = vpop.f32.mrf.mxu0
    %976 = vdwg.mxu0
    %v978 = vsel %vm448, %v893, 0
    %980 = vmatprep.subr.mxu0 0.0
    %981 = vmatpush1.msra.mxu0 0.0
    %982 = vmatprep.subr.mxu0 0.0
    %983 = vmatpush1.msra.mxu0 0.0
    %984 = vmatprep.subr.mxu0 0.0
    %985 = vmatpush1.msra.mxu0 0.0
    %986 = vmatprep.subr.mxu0 0.0
    %987 = vmatpush1.msra.mxu0 0.0
    %988 = vmatprep.subr.mxu0 0.0
    %989 = vmatpush1.msra.mxu0 0.0
    %990 = vmatprep.subr.mxu0 0.0
    %991 = vmatpush1.msra.mxu0 0.0
    %992 = vmatprep.subr.mxu0 0.0
    %993 = vmatpush1.msra.mxu0 0.0
    %994 = vmatprep.subr.mxu0 0.0
    %995 = vmatpush1.msra.mxu0 0.0
    %996 = vmatprep.subr.mxu0 0.0
    %997 = vmatpush1.msra.mxu0 0.0
    %998 = vmatprep.subr.mxu0 0.0
    %999 = vmatpush1.msra.mxu0 0.0
    %1000 = vmatprep.subr.mxu0 0.0
    %1001 = vmatpush1.msra.mxu0 0.0
    %1002 = vmatprep.subr.mxu0 0.0
    %1003 = vmatpush1.msra.mxu0 0.0
    %1004 = vmatprep.subr.mxu0 0.0
    %1005 = vmatpush1.msra.mxu0 0.0
    %1006 = vmatprep.subr.mxu0 0.0
    %1007 = vmatpush1.msra.mxu0 0.0
    %1008 = vmatprep.subr.mxu0 0.0
    %1009 = vmatpush1.msra.mxu0 0.0
    %1010 = vmatprep.subr.mxu0 0.0
    %1011 = vmatpush1.msra.mxu0 %v898
    %1012 = vmatprep.subr.mxu0 0.0
    %1013 = vmatpush2.msra.mxu0 0.0
    %1014 = vmatprep.subr.mxu0 0.0
    %1015 = vmatpush2.msra.mxu0 0.0
    %1016 = vmatprep.subr.mxu0 0.0
    %1017 = vmatpush2.msra.mxu0 0.0
    %1018 = vmatprep.subr.mxu0 0.0
    %1019 = vmatpush2.msra.mxu0 0.0
    %1020 = vmatprep.subr.mxu0 0.0
    %1021 = vmatpush2.msra.mxu0 0.0
    %1022 = vmatprep.subr.mxu0 0.0
    %1023 = vmatpush2.msra.mxu0 0.0
    %1024 = vmatprep.subr.mxu0 0.0
    %1025 = vmatpush2.msra.mxu0 0.0
    %1026 = vmatprep.subr.mxu0 0.0
    %1027 = vmatpush2.msra.mxu0 0.0
    %1028 = vmatprep.subr.mxu0 0.0
    %1029 = vmatpush2.msra.mxu0 0.0
    %1030 = vmatprep.subr.mxu0 0.0
    %1031 = vmatpush2.msra.mxu0 0.0
    %1032 = vmatprep.subr.mxu0 0.0
    %1033 = vmatpush2.msra.mxu0 0.0
    %1034 = vmatprep.subr.mxu0 0.0
    %1035 = vmatpush2.msra.mxu0 0.0
    %1036 = vmatprep.subr.mxu0 0.0
    %1037 = vmatpush2.msra.mxu0 0.0
    %1038 = vmatprep.subr.mxu0 0.0
    %1039 = vmatpush2.msra.mxu0 0.0
    %1040 = vmatprep.subr.mxu0 0.0
    %1041 = vmatpush2.msra.mxu0 0.0
    %1042 = vmatprep.subr.mxu0 0.0
    %1043 = vmatpush2.msra.mxu0 0.0
    %1044 = vmatprep.mubr.f32.mxu0 0.0
    %1045 = vmatmul.mubr.f32.gmra.mxu0 %v978
    %v1046 = vpop.f32.mrf.mxu0
    %v1047 = vadd.f32 %v974, %v1046
    %v1048 = vpop.f32.mrf.mxu0
    %1049 = vdwg.mxu0
    %1051 = vrot.lane.b32.xlu0 %v897, 112
    %v1052 = vpop.permute.xlu0 %1051
    %v1053 = vsel %vm597, %v1052, 0
    %1055 = vmatprep.subr.mxu0 0.0
    %1056 = vmatpush1.msra.mxu0 0.0
    %1057 = vmatprep.subr.mxu0 0.0
    %1058 = vmatpush1.msra.mxu0 0.0
    %1059 = vmatprep.subr.mxu0 0.0
    %1060 = vmatpush1.msra.mxu0 0.0
    %1061 = vmatprep.subr.mxu0 0.0
    %1062 = vmatpush1.msra.mxu0 0.0
    %1063 = vmatprep.subr.mxu0 0.0
    %1064 = vmatpush1.msra.mxu0 0.0
    %1065 = vmatprep.subr.mxu0 0.0
    %1066 = vmatpush1.msra.mxu0 0.0
    %1067 = vmatprep.subr.mxu0 0.0
    %1068 = vmatpush1.msra.mxu0 0.0
    %1069 = vmatprep.subr.mxu0 0.0
    %1070 = vmatpush1.msra.mxu0 0.0
    %1071 = vmatprep.subr.mxu0 0.0
    %1072 = vmatpush1.msra.mxu0 0.0
    %1073 = vmatprep.subr.mxu0 0.0
    %1074 = vmatpush1.msra.mxu0 0.0
    %1075 = vmatprep.subr.mxu0 0.0
    %1076 = vmatpush1.msra.mxu0 0.0
    %1077 = vmatprep.subr.mxu0 0.0
    %1078 = vmatpush1.msra.mxu0 0.0
    %1079 = vmatprep.subr.mxu0 0.0
    %1080 = vmatpush1.msra.mxu0 0.0
    %1081 = vmatprep.subr.mxu0 0.0
    %1082 = vmatpush1.msra.mxu0 0.0
    %1083 = vmatprep.subr.mxu0 0.0
    %1084 = vmatpush1.msra.mxu0 %v901
    %1085 = vmatprep.subr.mxu0 0.0
    %1086 = vmatpush1.msra.mxu0 %v900
    %1087 = vmatprep.subr.mxu0 0.0
    %1088 = vmatpush2.msra.mxu0 0.0
    %1089 = vmatprep.subr.mxu0 0.0
    %1090 = vmatpush2.msra.mxu0 0.0
    %1091 = vmatprep.subr.mxu0 0.0
    %1092 = vmatpush2.msra.mxu0 0.0
    %1093 = vmatprep.subr.mxu0 0.0
    %1094 = vmatpush2.msra.mxu0 0.0
    %1095 = vmatprep.subr.mxu0 0.0
    %1096 = vmatpush2.msra.mxu0 0.0
    %1097 = vmatprep.subr.mxu0 0.0
    %1098 = vmatpush2.msra.mxu0 0.0
    %1099 = vmatprep.subr.mxu0 0.0
    %1100 = vmatpush2.msra.mxu0 0.0
    %1101 = vmatprep.subr.mxu0 0.0
    %1102 = vmatpush2.msra.mxu0 0.0
    %1103 = vmatprep.subr.mxu0 0.0
    %1104 = vmatpush2.msra.mxu0 0.0
    %1105 = vmatprep.subr.mxu0 0.0
    %1106 = vmatpush2.msra.mxu0 0.0
    %1107 = vmatprep.subr.mxu0 0.0
    %1108 = vmatpush2.msra.mxu0 0.0
    %1109 = vmatprep.subr.mxu0 0.0
    %1110 = vmatpush2.msra.mxu0 0.0
    %1111 = vmatprep.subr.mxu0 0.0
    %1112 = vmatpush2.msra.mxu0 0.0
    %1113 = vmatprep.subr.mxu0 0.0
    %1114 = vmatpush2.msra.mxu0 0.0
    %1115 = vmatprep.subr.mxu0 0.0
    %1116 = vmatpush2.msra.mxu0 0.0
    %1117 = vmatprep.subr.mxu0 0.0
    %1118 = vmatpush2.msra.mxu0 0.0
    %1119 = vmatprep.mubr.f32.mxu0 0.0
    %1120 = vmatmul.mubr.f32.gmra.mxu0 %v1053
    %v1121 = vpop.f32.mrf.mxu0
    %v1122 = vadd.f32 0.0, %v1121
    %v1123 = vpop.f32.mrf.mxu0
    %1124 = vdwg.mxu0
    %v1125 = vadd.f32 %v1047, %v1122
    %v1126 = vld [vmem:[%s8] sm:$0x1]
    %v1128 = vlaneseq
    %v1129 = vshrl.u32 %v1128, 7
    %v1130 = vsub.s32 0, %v1129
    %v1131 = vrot.slane %v1126, %v1130
    %v1133 = vadd.f32 %v1125, %v1131
    %vm1134 = vcmp.ne.f32.partialorder %v1133, %v1133
    %v1135 = vsel %vm1134, 0.0, %v1133
    %vm1136 = vcmask 15360
    %1137 = vst.msk [vmem:[%s9] sm:$0xff] %vm1136, %v1135
    // Predicated region
    $region42: #{tpu_custom_call.1} parent=1 // pred_check
      _
    $region43: #{tpu_custom_call.1} parent=1 // pred_check_branch
      %1139 = sbr.rel (0) target = $region45
    $region44: #{tpu_custom_call.1} parent=1 // pred_region
      _
    $region45: #{tpu_custom_call.1} parent=1 // pred_fallthru
      _
    // Predicated region
    $region46: #{tpu_custom_call.1} parent=1 // pred_check
      _
    $region47: #{tpu_custom_call.1} parent=1 // pred_check_branch
      %1141 = sbr.rel (0) target = $region49
    $region48: #{tpu_custom_call.1} parent=1 // pred_region
      _
    $region49: #{tpu_custom_call.1} parent=1 // pred_fallthru
      _
    %1142 = vsyncpa [#allocation3], 1

</llo_original>
